<compile_context>
chip_gen: v6e
topology: v6e:2x2x1
jax: 0.10.0
libtpu: 0.0.40
codegen_flags: <defaults>
</compile_context>

<pallas_src>
from functools import partial

import jax
import jax.numpy as jnp
from jax.experimental import pallas as pl
from jax.experimental.pallas import tpu as pltpu

LN_EPS = 1e-6
_LANES = 128


# ----------------------------------------------------------------------------- kernels
def _layernorm_rowwise_kernel(x_ref, g_ref, b_ref, o_ref, *, eps):
    """One logical row per vreg-row.  Used when D >= 128 (or packing is not possible)."""
    x = x_ref[...].astype(jnp.float32)                    # (br, d) — f32 math in-kernel
    d = x.shape[-1]
    # One pass: the two XLU reductions are independent and can overlap.
    s1 = jnp.sum(x, axis=-1, keepdims=True)
    s2 = jnp.sum(x * x, axis=-1, keepdims=True)
    mean = s1 * (1.0 / d)
    # Unbiased variance (torch.Tensor.std default).  E[x^2]-E[x]^2 can cancel for data
    # with a huge mean; clamp >= 0 (fine for typical pre-norm activations in f32).
    var = jnp.maximum(s2 - s1 * mean, 0.0) * (1.0 / (d - 1))
    std = jnp.sqrt(var)
    inv = pl.reciprocal(std + eps, approx=False)          # exact: operand is only (br, 1)
    o_ref[...] = (g_ref[...] * ((x - mean) * inv) + b_ref[...]).astype(o_ref.dtype)


def _layernorm_packed_kernel(x_ref, g_ref, b_ref, seg_ref, o_ref, *, eps, d):
    """Lane-dense path for D < 128: each 128-lane row holds pack = 128//d logical rows.

    Per-segment (per logical row) sums are computed on the MXU with a (128,128)
    block-diagonal ones matrix, so all loads/stores stay unmasked full-lane vld/vst.
    """
    x = x_ref[...].astype(jnp.float32)                    # (brp, 128)
    seg = seg_ref[...]                                    # (128, 128) bf16 block-diag ones

    def seg_sum(v):
        # hi/lo split: v_hi is exactly representable in bf16 and seg is 0/1, so the
        # bf16 matmuls (f32 accumulation) reproduce the f32 segment sum exactly; the
        # lo correction term carries the residual.  No reliance on matmul precision.
        v_hi = v.astype(jnp.bfloat16)
        v_lo = (v - v_hi.astype(jnp.float32)).astype(jnp.bfloat16)
        return (jnp.dot(v_hi, seg, preferred_element_type=jnp.float32)
                + jnp.dot(v_lo, seg, preferred_element_type=jnp.float32))

    mean = seg_sum(x) * (1.0 / d)                         # broadcast back to every lane
    diff = x - mean
    var = seg_sum(diff * diff) * (1.0 / (d - 1))          # unbiased (torch std default)
    inv = pl.reciprocal(jnp.sqrt(var) + eps, approx=False)  # eps outside the sqrt
    o_ref[...] = (g_ref[...] * (diff * inv) + b_ref[...]).astype(o_ref.dtype)


# ----------------------------------------------------------------------------- wrapper
def _pick_block_rows(n_rows, row_bytes, granule, target_bytes=512 * 1024):
    """Rows per grid step: ~512 KiB of native-dtype data per block.

    Double-buffered in+out plus f32 temporaries stays ~6-8 MiB — safe under v5e's 16 MiB
    default scoped VMEM and v7x's 32 MiB, so no vmem_limit_bytes override is needed.
    """
    if n_rows <= granule:
        return n_rows                                      # one full-dim block (legal)
    br = max(granule, (target_bytes // max(row_bytes, 1)) // granule * granule)
    br = min(br, pl.cdiv(n_rows, granule) * granule)
    if br >= n_rows:
        # Guarantee >= 2 grid steps so v7x's two TensorCores both get row tiles.
        br = max(granule, pl.cdiv(pl.cdiv(n_rows, 2), granule) * granule)
    return br


def layer_norm(x, gamma, beta, eps=LN_EPS):
    """LayerNorm over the last axis of x (any leading shape); output dtype == x.dtype."""
    orig_shape = x.shape
    orig_dtype = x.dtype
    d = orig_shape[-1]
    x2 = x.reshape(-1, d)                                  # free (contiguous), no dtype cast
    rows = x2.shape[0]
    itemsize = x2.dtype.itemsize
    granule = 8 * max(1, 4 // itemsize)                    # sublane tile: 8 f32 / 16 bf16

    g = gamma.reshape(1, d).astype(jnp.float32)            # tiny params, resident in VMEM
    b = beta.reshape(1, d).astype(jnp.float32)

    pack = _LANES // d if (d < _LANES and _LANES % d == 0) else 1
    use_packed = pack > 1 and rows % pack == 0 and (rows // pack) >= granule

    if use_packed:
        # ---- lane-dense path (D < 128): pack `pack` logical rows per 128-lane row ----
        prows = rows // pack
        xp = x2.reshape(prows, _LANES)                     # free reshape of contiguous slab
        gp = jnp.tile(g, (1, pack))                        # (1, 128)
        bp = jnp.tile(b, (1, pack))
        lane = jnp.arange(_LANES)
        seg = (lane[:, None] // d == lane[None, :] // d).astype(jnp.bfloat16)  # (128,128)

        br = _pick_block_rows(prows, _LANES * itemsize, granule)
        grid = (pl.cdiv(prows, br),)
        out = pl.pallas_call(
            partial(_layernorm_packed_kernel, eps=eps, d=d),
            grid=grid,
            in_specs=[
                pl.BlockSpec((br, _LANES), lambda i: (i, 0)),
                pl.BlockSpec((1, _LANES), lambda i: (0, 0)),
                pl.BlockSpec((1, _LANES), lambda i: (0, 0)),
                pl.BlockSpec((_LANES, _LANES), lambda i: (0, 0)),
            ],
            out_specs=pl.BlockSpec((br, _LANES), lambda i: (i, 0)),
            out_shape=jax.ShapeDtypeStruct((prows, _LANES), orig_dtype),
            compiler_params=pltpu.CompilerParams(
                dimension_semantics=("parallel",)),        # shard row tiles over v7x's 2 TCs
        )(xp, gp, bp, seg)
        return out.reshape(orig_shape)

    # ---- plain row-wise path (D >= 128, or row count not packable) ----
    br = _pick_block_rows(rows, d * itemsize, granule)
    grid = (pl.cdiv(rows, br),)                            # ragged tail handled by Pallas
    out = pl.pallas_call(
        partial(_layernorm_rowwise_kernel, eps=eps),
        grid=grid,
        in_specs=[
            pl.BlockSpec((br, d), lambda i: (i, 0)),
            pl.BlockSpec((1, d), lambda i: (0, 0)),
            pl.BlockSpec((1, d), lambda i: (0, 0)),
        ],
        out_specs=pl.BlockSpec((br, d), lambda i: (i, 0)),
        out_shape=jax.ShapeDtypeStruct((rows, d), orig_dtype),
        compiler_params=pltpu.CompilerParams(
            dimension_semantics=("parallel",)),
    )(x2, g, b)
    return out.reshape(orig_shape)


# ------------------------------------------------------------------------------- demo
if __name__ == "__main__":
    B, T, D = 2, 8, 32  # batch=2, seq=8, hidden=32 (spec-consistent small shape)

    key = jax.random.PRNGKey(0)
    kx, kg, kb = jax.random.split(key, 3)
    x = jax.random.normal(kx, (B, T, D), jnp.float32)
    gamma = jnp.ones((D,), jnp.float32) + 0.1 * jax.random.normal(kg, (D,), jnp.float32)
    beta = 0.1 * jax.random.normal(kb, (D,), jnp.float32)

    ln = jax.jit(layer_norm)

    def ref_ln(xv, g, b, eps=LN_EPS):
        xf = xv.astype(jnp.float32)
        mean = jnp.mean(xf, axis=-1, keepdims=True)
        diff = xf - mean
        std = jnp.sqrt(jnp.sum(diff * diff, axis=-1, keepdims=True) / (xv.shape[-1] - 1))
        return (g * diff / (std + eps) + b).astype(xv.dtype)

    # 1) Spec-sized f32 case (16 rows -> row-wise path).
    y = ln(x, gamma, beta)
    jax.block_until_ready(y)
    assert y.shape == x.shape and y.dtype == x.dtype
    assert bool(jnp.all(jnp.isfinite(y)))
    assert bool(jnp.allclose(y, ref_ln(x, gamma, beta), atol=1e-4, rtol=1e-4))

    # 2) Larger f32 case exercising the lane-packed (D < 128) path.
    x2 = jax.random.normal(jax.random.PRNGKey(1), (4, 64, D), jnp.float32)
    y2 = ln(x2, gamma, beta)
    jax.block_until_ready(y2)
    assert y2.dtype == jnp.float32
    assert bool(jnp.allclose(y2, ref_ln(x2, gamma, beta), atol=1e-4, rtol=1e-4))

    # 3) bf16 activations: native-dtype DMA, f32 math in-kernel, bf16 output preserved.
    xb = x2.astype(jnp.bfloat16)
    yb = ln(xb, gamma, beta)
    jax.block_until_ready(yb)
    assert yb.dtype == jnp.bfloat16
    assert bool(jnp.allclose(yb.astype(jnp.float32),
                             ref_ln(xb, gamma, beta).astype(jnp.float32),
                             atol=2e-2, rtol=2e-2))

    print("KERNEL_OK")
</pallas_src>

<mosaic_0001>
module attributes {stable_mosaic.version = 11 : i64} {
  func.func @_layernorm_rowwise_kernel(%arg0: i32, %arg1: memref<8x32xf32, #tpu.memory_space<vmem>>, %arg2: memref<1x32xf32, #tpu.memory_space<vmem>>, %arg3: memref<1x32xf32, #tpu.memory_space<vmem>>, %arg4: memref<8x32xf32, #tpu.memory_space<vmem>>) attributes {dimension_semantics = [#tpu.dimension_semantics<parallel>], iteration_bounds = array<i64: 2>, scalar_prefetch = 0 : i64, scratch_operands = 0 : i64, tpu.core_type = #tpu.core_type<tc>, window_params = [{transform_indices = @transform_0, window_bounds = array<i64: 8, 32>}, {pipeline_mode = #tpu.pipeline_mode<synchronous>, transform_indices = @transform_1, window_bounds = array<i64: 1, 32>}, {pipeline_mode = #tpu.pipeline_mode<synchronous>, transform_indices = @transform_2, window_bounds = array<i64: 1, 32>}, {transform_indices = @transform_3, window_bounds = array<i64: 8, 32>}]} {
    %c0 = arith.constant 0 : index
    %c0_0 = arith.constant 0 : index
    %0 = vector.load %arg1[%c0, %c0_0] : memref<8x32xf32, #tpu.memory_space<vmem>>, vector<8x32xf32>
    %cst = arith.constant dense<0.000000e+00> : vector<8xf32>
    %1 = vector.multi_reduction <add>, %0, %cst [1] : vector<8x32xf32> to vector<8xf32>
    %2 = vector.shape_cast %1 : vector<8xf32> to vector<8x1xf32>
    %3 = arith.mulf %0, %0 : vector<8x32xf32>
    %cst_1 = arith.constant dense<0.000000e+00> : vector<8xf32>
    %4 = vector.multi_reduction <add>, %3, %cst_1 [1] : vector<8x32xf32> to vector<8xf32>
    %5 = vector.shape_cast %4 : vector<8xf32> to vector<8x1xf32>
    %cst_2 = arith.constant 3.125000e-02 : f32
    %6 = vector.broadcast %cst_2 : f32 to vector<8x1xf32>
    %7 = arith.mulf %2, %6 : vector<8x1xf32>
    %8 = arith.mulf %2, %7 : vector<8x1xf32>
    %9 = arith.subf %5, %8 : vector<8x1xf32>
    %cst_3 = arith.constant 0.000000e+00 : f32
    %10 = vector.broadcast %cst_3 : f32 to vector<8x1xf32>
    %11 = arith.maximumf %9, %10 : vector<8x1xf32>
    %cst_4 = arith.constant 0.0322580636 : f32
    %12 = vector.broadcast %cst_4 : f32 to vector<8x1xf32>
    %13 = arith.mulf %11, %12 : vector<8x1xf32>
    %14 = math.sqrt %13 : vector<8x1xf32>
    %cst_5 = arith.constant 9.99999997E-7 : f32
    %15 = vector.broadcast %cst_5 : f32 to vector<8x1xf32>
    %16 = arith.addf %14, %15 : vector<8x1xf32>
    %17 = tpu.reciprocal %16 : vector<8x1xf32> -> vector<8x1xf32>
    %c0_6 = arith.constant 0 : index
    %c0_7 = arith.constant 0 : index
    %18 = vector.load %arg2[%c0_6, %c0_7] : memref<1x32xf32, #tpu.memory_space<vmem>>, vector<1x32xf32>
    %19 = vector.broadcast %7 : vector<8x1xf32> to vector<8x32xf32>
    %20 = arith.subf %0, %19 : vector<8x32xf32>
    %21 = vector.broadcast %17 : vector<8x1xf32> to vector<8x32xf32>
    %22 = arith.mulf %20, %21 : vector<8x32xf32>
    %23 = vector.broadcast %18 : vector<1x32xf32> to vector<8x32xf32>
    %24 = arith.mulf %23, %22 : vector<8x32xf32>
    %c0_8 = arith.constant 0 : index
    %c0_9 = arith.constant 0 : index
    %25 = vector.load %arg3[%c0_8, %c0_9] : memref<1x32xf32, #tpu.memory_space<vmem>>, vector<1x32xf32>
    %26 = vector.broadcast %25 : vector<1x32xf32> to vector<8x32xf32>
    %27 = arith.addf %24, %26 : vector<8x32xf32>
    %c0_10 = arith.constant 0 : index
    %c0_11 = arith.constant 0 : index
    %28 = vector.load %arg4[%c0_10, %c0_11] : memref<8x32xf32, #tpu.memory_space<vmem>>, vector<8x32xf32>
    tpu.vector_store %arg4[%c0_10, %c0_11], %27 {strides = array<i32>} : memref<8x32xf32, #tpu.memory_space<vmem>>, vector<8x32xf32>,
    return
  }
  func.func @transform_0(%arg0: i32) -> (i32, i32) {
    %c0_i32 = arith.constant 0 : i32
    %c0_i32_0 = arith.constant 0 : i32
    return %arg0, %c0_i32 : i32, i32
  }
  func.func @transform_1(%arg0: i32) -> (i32, i32) {
    %c0_i32 = arith.constant 0 : i32
    %c0_i32_0 = arith.constant 0 : i32
    %c0_i32_1 = arith.constant 0 : i32
    return %c0_i32, %c0_i32_0 : i32, i32
  }
  func.func @transform_2(%arg0: i32) -> (i32, i32) {
    %c0_i32 = arith.constant 0 : i32
    %c0_i32_0 = arith.constant 0 : i32
    %c0_i32_1 = arith.constant 0 : i32
    return %c0_i32, %c0_i32_0 : i32, i32
  }
  func.func @transform_3(%arg0: i32) -> (i32, i32) {
    %c0_i32 = arith.constant 0 : i32
    %c0_i32_0 = arith.constant 0 : i32
    return %arg0, %c0_i32 : i32, i32
  }
}

</mosaic_0001>

<llo_original>
// kernel: layer_norm.1
$region0: #{layer_norm.1}
  #allocation0 [shape = 'u32[]', space=smem, size = 0x4, offset = 0x4, fixed_abs, tag = 'smem constant byte address 0x4 - core index']
  #allocation1 [shape = 'u32[144,128]{1,0:T(1,128)}', space=vmem, size = 0x12000, scoped, tag = 'internal scratch']
  %s0 = inlined_call_operand.hbm [shape: f32[16,32], index: 0, kind: input, shape index: {}]
  %s1 = inlined_call_operand.vmem [shape: f32[1,32], index: 1, kind: input, shape index: {}]
  %s2 = inlined_call_operand.vmem [shape: f32[1,32], index: 2, kind: input, shape index: {}]
  %s3 = inlined_call_operand.hbm [shape: f32[16,32], index: 3, kind: output, shape index: {}]
  %s4 = sld [smem:[#allocation0]]
  $region49: #{layer_norm.1} parent=0
    _
  %s6 = ssub.s32 1, %s4
  %s7 = scalar_select 0, %s6, %s4
  $region1: #{layer_norm.1} parent=0
    #allocation2 [shape = 'u8[8192]{0}', space=vmem, size = 0x2000, scoped, tag = 'input window, operand 0']
    #allocation3 [shape = 's32[2]{0}', space=sflag, size = 0x8, scoped, tag = 'scoped memory for layer_norm.1']
    #allocation4 [shape = 's32[2]{0}', space=sflag, size = 0x8, scoped, tag = 'scoped memory for layer_norm.1']
    #allocation5 [shape = 'u8[8192]{0}', space=vmem, size = 0x2000, scoped, tag = 'output window, operand 0']
    %8 = vsyncpa [#allocation3], 0
    %s9 = scalar_lea.sflag [#allocation3], 1
    %10 = vsyncpa %s9, 0
    %11 = vsyncpa [#allocation4], 0
    %s12 = scalar_lea.sflag [#allocation4], 1
    %13 = vsyncpa %s12, 0
    loop: start=0, step=1, limit=4
    $region2: #{layer_norm.1} parent=1 // loop_pre_header
      _
    $region3: #{layer_norm.1} parent=1 // loop_header
      %s15 = sphi 0, %s19
      %p16 = scmp.ge.s32.totalorder %s15, 4
      %s25 = sphi 0, %s27
      %s28 = sphi 0, %s25
      %s29 = sphi 0, %s28
      %s45 = sphi 0, %s29
      %s49 = sphi 0, %s49
      %s51 = sphi 0, %s49
      %s52 = sphi 0, %s51
      %s66 = sphi 0, %s52
      %s70 = sphi 0, %s70
      %s72 = sphi 0, %s70
      %s73 = sphi 0, %s72
      %s87 = sphi 0, %s73
      %s93 = sphi 0, %s95
      %s96 = sphi 0, %s93
      %s97 = sphi 0, %s96
      %s113 = sphi 0, %s97
    $region4: #{layer_norm.1} parent=1 // loop_header_branch
      %18 = sbr.rel (%p16) target = $region8
    $region5: #{layer_norm.1} parent=1 // loop_body
      %s20 = ssub.s32 %s15, 1
      %s21 = ssub.s32 %s15, 2
      %s22 = sadd.s32 %s15, 1
      %s23 = ssub.s32 %s15, %s22
      %p24 = scmp.eq.s32.totalorder %s23, 0
      %s26 = sadd.s32 %s25, 1
      %s27 = scalar_select %p24, %s25, %s26
      %p30 = pneg %p24
      %p31 = scmp.eq.s32.totalorder %s15, 1
      %p32 = por %p30, %p31
      %p33 = scmp.ne.s32.totalorder %s25, %s28
      %p34 = scmp.eq.s32.totalorder %s15, 0
      %p35 = por %p33, %p34
      %p36 = scmp.ne.s32.totalorder %s25, %s28
      %p37 = scmp.eq.s32.totalorder %s20, 1
      %p38 = por %p36, %p37
      %p39 = scmp.ne.s32.totalorder %s28, %s29
      %p40 = scmp.eq.s32.totalorder %s20, 0
      %p41 = por %p39, %p40
      %p42 = scmp.ne.s32.totalorder %s28, %s29
      %p43 = scmp.eq.s32.totalorder %s21, 1
      %p44 = por %p42, %p43
      %p46 = scmp.ne.s32.totalorder %s29, %s45
      %p47 = scmp.eq.s32.totalorder %s21, 0
      %p48 = por %p46, %p47
      %s50 = sadd.s32 %s49, 1
      %p53 = scmp.eq.s32.totalorder %s15, 1
      %p54 = scmp.ne.s32.totalorder %s49, %s51
      %p55 = scmp.eq.s32.totalorder %s15, 0
      %p56 = por %p54, %p55
      %p57 = scmp.ne.s32.totalorder %s49, %s51
      %p58 = scmp.eq.s32.totalorder %s20, 1
      %p59 = por %p57, %p58
      %p60 = scmp.ne.s32.totalorder %s51, %s52
      %p61 = scmp.eq.s32.totalorder %s20, 0
      %p62 = por %p60, %p61
      %p63 = scmp.ne.s32.totalorder %s51, %s52
      %p64 = scmp.eq.s32.totalorder %s21, 1
      %p65 = por %p63, %p64
      %p67 = scmp.ne.s32.totalorder %s52, %s66
      %p68 = scmp.eq.s32.totalorder %s21, 0
      %p69 = por %p67, %p68
      %s71 = sadd.s32 %s70, 1
      %p74 = scmp.eq.s32.totalorder %s15, 1
      %p75 = scmp.ne.s32.totalorder %s70, %s72
      %p76 = scmp.eq.s32.totalorder %s15, 0
      %p77 = por %p75, %p76
      %p78 = scmp.ne.s32.totalorder %s70, %s72
      %p79 = scmp.eq.s32.totalorder %s20, 1
      %p80 = por %p78, %p79
      %p81 = scmp.ne.s32.totalorder %s72, %s73
      %p82 = scmp.eq.s32.totalorder %s20, 0
      %p83 = por %p81, %p82
      %p84 = scmp.ne.s32.totalorder %s72, %s73
      %p85 = scmp.eq.s32.totalorder %s21, 1
      %p86 = por %p84, %p85
      %p88 = scmp.ne.s32.totalorder %s73, %s87
      %p89 = scmp.eq.s32.totalorder %s21, 0
      %p90 = por %p88, %p89
      %s91 = ssub.s32 %s15, %s22
      %p92 = scmp.eq.s32.totalorder %s91, 0
      %s94 = sadd.s32 %s93, 1
      %s95 = scalar_select %p92, %s93, %s94
      %p98 = pneg %p92
      %p99 = scmp.eq.s32.totalorder %s15, 1
      %p100 = por %p98, %p99
      %p101 = scmp.ne.s32.totalorder %s93, %s96
      %p102 = scmp.eq.s32.totalorder %s15, 0
      %p103 = por %p101, %p102
      %p104 = scmp.ne.s32.totalorder %s93, %s96
      %p105 = scmp.eq.s32.totalorder %s20, 1
      %p106 = por %p104, %p105
      %p107 = scmp.ne.s32.totalorder %s96, %s97
      %p108 = scmp.eq.s32.totalorder %s20, 0
      %p109 = por %p107, %p108
      %p110 = scmp.ne.s32.totalorder %s96, %s97
      %p111 = scmp.eq.s32.totalorder %s21, 1
      %p112 = por %p110, %p111
      %p114 = scmp.ne.s32.totalorder %s97, %s113
      %p115 = scmp.eq.s32.totalorder %s21, 0
      %p116 = por %p114, %p115
      %p117 = scmp.le.s32.totalorder 1, %s15
      %p118 = scmp.lt.s32.totalorder %s15, 3
      %p119 = pnand %p117, %p118
      %p120 = pneg %p119
      // Predicated region
      $region9: #{layer_norm.1} parent=5 // pred_check
        _
      $region10: #{layer_norm.1} parent=5 // pred_check_branch
        %122 = sbr.rel (%p119) target = $region12
      $region11: #{layer_norm.1} parent=5 // pred_region
        %s123 = ssub.s32 %s15, 1
        // Predicated region
        $region13: #{layer_norm.1} parent=11 // pred_check
          %p124 = pneg %p62
        $region14: #{layer_norm.1} parent=11 // pred_check_branch
          %126 = sbr.rel (%p124) target = $region16
        $region15: #{layer_norm.1} parent=11 // pred_region
          _
        $region16: #{layer_norm.1} parent=11 // pred_fallthru
          _
        // Predicated region
        $region17: #{layer_norm.1} parent=11 // pred_check
          %p127 = pneg %p83
        $region18: #{layer_norm.1} parent=11 // pred_check_branch
          %129 = sbr.rel (%p127) target = $region20
        $region19: #{layer_norm.1} parent=11 // pred_region
          _
        $region20: #{layer_norm.1} parent=11 // pred_fallthru
          _
      $region12: #{layer_norm.1} parent=5 // pred_fallthru
        _
      %p130 = scmp.lt.s32.totalorder %s15, 2
      // Predicated region
      $region21: #{layer_norm.1} parent=5 // pred_check
        %p131 = pneg %p130
      $region22: #{layer_norm.1} parent=5 // pred_check_branch
        %133 = sbr.rel (%p131) target = $region24
      $region23: #{layer_norm.1} parent=5 // pred_region
        // Predicated region
        $region25: #{layer_norm.1} parent=23 // pred_check
          %p134 = pneg %p35
        $region26: #{layer_norm.1} parent=23 // pred_check_branch
          %136 = sbr.rel (%p134) target = $region28
        $region27: #{layer_norm.1} parent=23 // pred_region
          %s137 = sand.u32 %s25, 1
          %s138 = scalar_lea.sflag [#allocation3], %s137
          %s139 = sand.u32 %s25, 1
          %s140 = smul.addr %s139, 8
          %s141 = scalar_lea.vmem [#allocation2], %s140
          %s143 = ssub.s32 128, 128
          %144 = vsyncadd %s138, %s143
          %s145 = smul.addr %s15, 128
          %s146 = scalar_lea.hbm %s0, %s145
          %s148 = sshll.u32 %s141, 4
          %s149 = int_to_ptr.vmem [resolvable:$true] %s148
          %151 = dma.hbm_to_vmem [thread:$0]  %s146, 128, %s149, %s138
        $region28: #{layer_norm.1} parent=23 // pred_fallthru
          _
      $region24: #{layer_norm.1} parent=5 // pred_fallthru
        _
      %p152 = scmp.le.s32.totalorder 1, %s15
      %p153 = scmp.lt.s32.totalorder %s15, 3
      %p154 = pnand %p152, %p153
      %p155 = pneg %p154
      // Predicated region
      $region29: #{layer_norm.1} parent=5 // pred_check
        _
      $region30: #{layer_norm.1} parent=5 // pred_check_branch
        %157 = sbr.rel (%p154) target = $region32
      $region31: #{layer_norm.1} parent=5 // pred_region
        %s158 = ssub.s32 %s15, 1
        %s159 = sand.u32 %s28, 1
        %s160 = scalar_lea.sflag [#allocation3], %s159
        %s161 = sand.u32 %s28, 1
        %s162 = smul.addr %s161, 8
        %s163 = scalar_lea.vmem [#allocation2], %s162
        // Predicated region
        $region33: #{layer_norm.1} parent=31 // pred_check
          %p164 = pneg %p41
        $region34: #{layer_norm.1} parent=31 // pred_check_branch
          %166 = sbr.rel (%p164) target = $region36
        $region35: #{layer_norm.1} parent=31 // pred_region
          %167 = dma.done %s160, 128
        $region36: #{layer_norm.1} parent=31 // pred_fallthru
          _
        %s168 = sand.u32 %s28, 1
        %s169 = scalar_lea.sflag [#allocation3], %s168
        %s170 = sand.u32 %s28, 1
        %s171 = smul.addr %s170, 8
        %s172 = scalar_lea.vmem [#allocation2], %s171
        %p173 = pneg %p41
        %p174 = pneg %p38
        %p175 = pneg %p62
        %p176 = pneg %p59
        %p177 = pneg %p83
        %p178 = pneg %p80
        %p179 = pneg %p109
        %p180 = pneg %p106
        %s181 = sand.u32 %s96, 1
        %s182 = scalar_lea.sflag [#allocation4], %s181
        %s183 = sand.u32 %s96, 1
        %s184 = smul.addr %s183, 8
        %s185 = scalar_lea.vmem [#allocation5], %s184
        %v186 = vld [vmem:[%s163] sm:$0xff]
        %vm187 = vcmask 261120
        %v188 = vsel %vm187, %v186, 0.0
        %189 = vadd.xlane.f32.xlu0 %v188
        %v190 = vpop.xlane.xlu0 %189
        %v191 = vmul.f32 %v186, %v186
        %v192 = vsel %vm187, %v191, 0.0
        %193 = vadd.xlane.f32.xlu0 %v192
        %v194 = vpop.xlane.xlu0 %193
        %v195 = vmul.f32 %v190, 0.03125
        %v196 = vmul.f32 %v190, %v195
        %v197 = vsub.f32 %v194, %v196
        %v198 = vmax.f32 %v197, 0.0
        %v199 = vmul.f32 %v198, 0.032258064
        %v200 = vrsqrt.pop %v199
        %v201 = vmul.f32 %v199, %v200
        %vm202 = vcmp.eq.f32.partialorder %v199, inf
        %v203 = vsel %vm202, %v199, %v201
        %vm204 = vcmp.eq.f32.partialorder %v199, 0.0
        %v205 = vand.u32 %v199, 2147483648
        %v206 = vsel %vm204, %v205, %v203
        %v207 = vadd.f32 %v206, 1e-06
        %v208 = vrcp.pop %v207
        %v209 = vld [vmem:[%s1] sm:$0x1]
        %v210 = vsub.f32 %v186, %v195
        %v211 = vmul.f32 %v210, %v208
        %v213 = vlaneseq
        %v214 = vshrl.u32 %v213, 7
        %v215 = vsub.s32 0, %v214
        %v216 = vrot.slane %v209, %v215
        %v218 = vmul.f32 %v216, %v211
        %v219 = vld [vmem:[%s2] sm:$0x1]
        %v221 = vlaneseq
        %v222 = vshrl.u32 %v221, 7
        %v223 = vsub.s32 0, %v222
        %v224 = vrot.slane %v219, %v223
        %v226 = vadd.f32 %v218, %v224
        %227 = vst.msk [vmem:[%s185] sm:$0xff] %vm187, %v226
        %s228 = sand.u32 %s96, 1
        %s229 = scalar_lea.sflag [#allocation4], %s228
        %s230 = sand.u32 %s96, 1
        %s231 = smul.addr %s230, 8
        %s232 = scalar_lea.vmem [#allocation5], %s231
        // Predicated region
        $region37: #{layer_norm.1} parent=31 // pred_check
          %p233 = pneg %p106
        $region38: #{layer_norm.1} parent=31 // pred_check_branch
          %235 = sbr.rel (%p233) target = $region40
        $region39: #{layer_norm.1} parent=31 // pred_region
          %s237 = ssub.s32 128, 128
          %238 = vsyncadd %s229, %s237
          %s239 = smul.addr %s20, 128
          %s240 = scalar_lea.hbm %s3, %s239
          %s242 = sshll.u32 %s232, 4
          %s243 = int_to_ptr.vmem [resolvable:$true] %s242
          %245 = dma.vmem_to_hbm [thread:$0]  %s243, 128, %s240, %s229
        $region40: #{layer_norm.1} parent=31 // pred_fallthru
          _
      $region32: #{layer_norm.1} parent=5 // pred_fallthru
        _
      %p246 = scmp.le.s32.totalorder 2, %s15
      // Predicated region
      $region41: #{layer_norm.1} parent=5 // pred_check
        %p247 = pneg %p246
      $region42: #{layer_norm.1} parent=5 // pred_check_branch
        %249 = sbr.rel (%p247) target = $region44
      $region43: #{layer_norm.1} parent=5 // pred_region
        %s250 = ssub.s32 %s15, 2
        // Predicated region
        $region45: #{layer_norm.1} parent=43 // pred_check
          %p251 = pneg %p112
        $region46: #{layer_norm.1} parent=43 // pred_check_branch
          %253 = sbr.rel (%p251) target = $region48
        $region47: #{layer_norm.1} parent=43 // pred_region
          %s254 = sand.u32 %s97, 1
          %s255 = scalar_lea.sflag [#allocation4], %s254
          %s256 = sand.u32 %s97, 1
          %s257 = smul.addr %s256, 8
          %s258 = scalar_lea.vmem [#allocation5], %s257
          %259 = dma.done %s255, 128
        $region48: #{layer_norm.1} parent=43 // pred_fallthru
          _
      $region44: #{layer_norm.1} parent=5 // pred_fallthru
        _
    $region6: #{layer_norm.1} parent=1 // loop_footer
      %s19 = sadd.s32 1, %s15
    $region7: #{layer_norm.1} parent=1 // loop_footer_branch
      %14 = sbr.rel target = $region3
    $region8: #{layer_norm.1} parent=1 // loop_exit
      _
    %260 = vsyncpa [#allocation3], 1
    %s261 = scalar_lea.sflag [#allocation3], 1
    %262 = vsyncpa %s261, 1
    %263 = vsyncpa [#allocation4], 1
    %s264 = scalar_lea.sflag [#allocation4], 1
    %265 = vsyncpa %s264, 1

</llo_original>
